<compile_context>
chip_gen: v5e
topology: v5e:2x2
jax: 0.10.0
libtpu: 0.0.40
codegen_flags: <defaults>
</compile_context>

<pallas_src>
import functools

import jax
import jax.numpy as jnp
from jax.experimental import pallas as pl
from jax.experimental.pallas import tpu as pltpu

LANES = 128      # lane width of a vreg
SUBLANES = 8     # sublane count of a vreg

# hidden widths per GoalNetwork level
LEVEL_HIDDEN = {"super": (64, 32), "meso": (48, 24)}


def _round_up(x, m):
    return ((x + m - 1) // m) * m


# ----------------------------------------------------------------------------
# Fused kernel: relu(relu(x@W1+b1)@W2+b2)@W3+b3 for one batch tile.
#   x_ref : (TILE_B, input_dim) f32
#   w_ref : (3, P, P)           bf16   (padded, layer-stacked, (in, out) layout)
#   b_ref : (3, P)              f32
#   o_ref : (TILE_B, P)         f32
# ----------------------------------------------------------------------------
def _fused_mlp_kernel(x_ref, w_ref, b_ref, o_ref, *, input_dim):
    # bf16 MXU operands, f32 accumulate; bias+ReLU stay f32 on the VPU.
    x = x_ref[...].astype(jnp.bfloat16)

    h = jnp.dot(x, w_ref[0, :input_dim, :], preferred_element_type=jnp.float32)
    h = jnp.maximum(h + b_ref[0:1, :], 0.0)

    h = jnp.dot(h.astype(jnp.bfloat16), w_ref[1],
                preferred_element_type=jnp.float32)
    h = jnp.maximum(h + b_ref[1:2, :], 0.0)

    o = jnp.dot(h.astype(jnp.bfloat16), w_ref[2],
                preferred_element_type=jnp.float32)
    o_ref[...] = (o + b_ref[2:3, :]).astype(o_ref.dtype)


# ----------------------------------------------------------------------------
# Parameter construction (PyTorch Linear layout: weight (out, in), y = x W^T + b)
# ----------------------------------------------------------------------------
def init_raw_params(key, input_dim, output_dim, level="super"):
    h1, h2 = LEVEL_HIDDEN[level]
    ks = jax.random.split(key, 6)
    s = 0.05
    return {
        "w1": jax.random.normal(ks[0], (h1, input_dim), jnp.float32) * s,
        "b1": jax.random.normal(ks[1], (h1,), jnp.float32) * s,
        "w2": jax.random.normal(ks[2], (h2, h1), jnp.float32) * s,
        "b2": jax.random.normal(ks[3], (h2,), jnp.float32) * s,
        "w3": jax.random.normal(ks[4], (output_dim, h2), jnp.float32) * s,
        "b3": jax.random.normal(ks[5], (output_dim,), jnp.float32) * s,
    }


def build_packed_params(raw, input_dim, output_dim, level="super"):
    """One-time host build: transpose to (in,out), zero-pad features to P lanes,
    stack the 3 layers into one bf16 weight slab and one f32 bias slab."""
    h1, h2 = LEVEL_HIDDEN[level]
    P = max(_round_up(d, LANES) for d in (input_dim, h1, h2, output_dim))

    w = jnp.zeros((3, P, P), jnp.float32)
    w = w.at[0, :input_dim, :h1].set(jnp.transpose(raw["w1"]).astype(jnp.float32))
    w = w.at[1, :h1, :h2].set(jnp.transpose(raw["w2"]).astype(jnp.float32))
    w = w.at[2, :h2, :output_dim].set(jnp.transpose(raw["w3"]).astype(jnp.float32))

    b = jnp.zeros((3, P), jnp.float32)
    b = b.at[0, :h1].set(raw["b1"].astype(jnp.float32))
    b = b.at[1, :h2].set(raw["b2"].astype(jnp.float32))
    b = b.at[2, :output_dim].set(raw["b3"].astype(jnp.float32))

    return {"w": w.astype(jnp.bfloat16), "b": b, "h1": h1, "h2": h2, "P": P}


# ----------------------------------------------------------------------------
# Forward pass: single batch-tiled pallas_call (GoalNetwork.forward)
# ----------------------------------------------------------------------------
def goal_network_forward(params, x, *, input_dim, output_dim, max_tile_b=512):
    assert x.ndim == 2 and x.shape[1] == input_dim, x.shape
    B = x.shape[0]
    P = params["P"]
    h1, h2 = params["h1"], params["h2"]

    # Tile sized for v7x's 64 MiB VMEM (tiny here); partial last block handled
    # by Pallas (out-of-bounds rows are masked on the write and sliced anyway).
    TILE_B = min(max_tile_b, _round_up(B, SUBLANES))
    grid = (pl.cdiv(B, TILE_B),)

    flops = 2 * B * (input_dim * h1 + h1 * h2 + h2 * output_dim)
    bytes_accessed = (B * input_dim * 4            # x read (f32)
                      + 3 * P * P * 2              # packed weights (bf16)
                      + 3 * P * 4                  # packed biases (f32)
                      + B * P * 4)                 # output write (f32, lane-dense)

    kernel = functools.partial(_fused_mlp_kernel, input_dim=input_dim)

    out_p = pl.pallas_call(
        kernel,
        out_shape=jax.ShapeDtypeStruct((B, P), jnp.float32),
        grid=grid,
        in_specs=[
            pl.BlockSpec((TILE_B, input_dim), lambda i: (i, 0)),   # x: tiled over batch
            pl.BlockSpec((3, P, P), lambda i: (0, 0, 0)),          # weights: VMEM-resident
            pl.BlockSpec((3, P), lambda i: (0, 0)),                # biases:  VMEM-resident
        ],
        out_specs=pl.BlockSpec((TILE_B, P), lambda i: (i, 0)),
        compiler_params=pltpu.CompilerParams(
            dimension_semantics=("parallel",)),                     # megacore on v7x
        cost_estimate=pl.CostEstimate(
            flops=flops, transcendentals=0, bytes_accessed=bytes_accessed),
    )(x.astype(jnp.float32), params["w"], params["b"])

    return out_p[:, :output_dim]


# Pure-JAX f32 reference (mirrors the nn.Sequential exactly).
def goal_network_ref(raw, x):
    h = jnp.maximum(x @ raw["w1"].T + raw["b1"], 0.0)
    h = jnp.maximum(h @ raw["w2"].T + raw["b2"], 0.0)
    return h @ raw["w3"].T + raw["b3"]


if __name__ == "__main__":
    INPUT_DIM, OUTPUT_DIM, LEVEL, BATCH = 32, 16, "super", 2

    key = jax.random.PRNGKey(0)
    pkey, xkey = jax.random.split(key)

    raw = init_raw_params(pkey, INPUT_DIM, OUTPUT_DIM, LEVEL)
    params = build_packed_params(raw, INPUT_DIM, OUTPUT_DIM, LEVEL)

    x = jax.random.uniform(xkey, (BATCH, INPUT_DIM), jnp.float32)

    out = goal_network_forward(params, x, input_dim=INPUT_DIM,
                               output_dim=OUTPUT_DIM)
    out = jax.block_until_ready(out)

    assert out.shape == (BATCH, OUTPUT_DIM), out.shape
    assert out.dtype == jnp.float32

    ref = jax.block_until_ready(goal_network_ref(raw, x))
    # bf16 MXU operands (f32 accumulate) vs f32 reference -> slightly looser tol.
    assert bool(jnp.allclose(out, ref, rtol=2e-2, atol=5e-3)), \
        f"max abs err {float(jnp.max(jnp.abs(out - ref)))}"

    print("KERNEL_OK")
</pallas_src>

<mosaic_0001>
module attributes {stable_mosaic.version = 11 : i64} {
  func.func @_fused_mlp_kernel(%arg0: i32, %arg1: memref<8x32xf32, #tpu.memory_space<vmem>>, %arg2: memref<3x128x128xbf16, #tpu.memory_space<vmem>>, %arg3: memref<3x128xf32, #tpu.memory_space<vmem>>, %arg4: memref<8x128xf32, #tpu.memory_space<vmem>>) attributes {dimension_semantics = [#tpu.dimension_semantics<parallel>], iteration_bounds = array<i64: 1>, scalar_prefetch = 0 : i64, scratch_operands = 0 : i64, tpu.core_type = #tpu.core_type<tc>, window_params = [{transform_indices = @transform_0, window_bounds = array<i64: 8, 32>}, {pipeline_mode = #tpu.pipeline_mode<synchronous>, transform_indices = @transform_1, window_bounds = array<i64: 3, 128, 128>}, {pipeline_mode = #tpu.pipeline_mode<synchronous>, transform_indices = @transform_2, window_bounds = array<i64: 3, 128>}, {transform_indices = @transform_3, window_bounds = array<i64: 8, 128>}]} {
    %c0 = arith.constant 0 : index
    %c0_0 = arith.constant 0 : index
    %0 = vector.load %arg1[%c0, %c0_0] : memref<8x32xf32, #tpu.memory_space<vmem>>, vector<8x32xf32>
    %1 = arith.truncf %0 : vector<8x32xf32> to vector<8x32xbf16>
    %c0_1 = arith.constant 0 : index
    %c0_2 = arith.constant 0 : index
    %c0_3 = arith.constant 0 : index
    %2 = vector.load %arg2[%c0_1, %c0_2, %c0_3] : memref<3x128x128xbf16, #tpu.memory_space<vmem>>, vector<1x32x128xbf16>
    %3 = vector.shape_cast %2 : vector<1x32x128xbf16> to vector<32x128xbf16>
    %cst = arith.constant dense<0.000000e+00> : vector<8x128xf32>
    %4 = tpu.matmul %1, %3, %cst {dimension_numbers = #tpu.dot_dimension_numbers<[1], [0], [0], [1], [0, 0, 1, 1], [], []>} : vector<8x32xbf16>, vector<32x128xbf16>, vector<8x128xf32> -> vector<8x128xf32>
    %c0_4 = arith.constant 0 : index
    %c0_5 = arith.constant 0 : index
    %5 = vector.load %arg3[%c0_4, %c0_5] : memref<3x128xf32, #tpu.memory_space<vmem>>, vector<1x128xf32>
    %6 = vector.broadcast %5 : vector<1x128xf32> to vector<8x128xf32>
    %7 = arith.addf %4, %6 : vector<8x128xf32>
    %cst_6 = arith.constant 0.000000e+00 : f32
    %8 = vector.broadcast %cst_6 : f32 to vector<8x128xf32>
    %9 = arith.maximumf %7, %8 : vector<8x128xf32>
    %10 = arith.truncf %9 : vector<8x128xf32> to vector<8x128xbf16>
    %c1 = arith.constant 1 : index
    %c0_7 = arith.constant 0 : index
    %c0_8 = arith.constant 0 : index
    %11 = vector.load %arg2[%c1, %c0_7, %c0_8] : memref<3x128x128xbf16, #tpu.memory_space<vmem>>, vector<1x128x128xbf16>
    %12 = vector.shape_cast %11 : vector<1x128x128xbf16> to vector<128x128xbf16>
    %cst_9 = arith.constant dense<0.000000e+00> : vector<8x128xf32>
    %13 = tpu.matmul %10, %12, %cst_9 {dimension_numbers = #tpu.dot_dimension_numbers<[1], [0], [0], [1], [0, 0, 1, 1], [], []>} : vector<8x128xbf16>, vector<128x128xbf16>, vector<8x128xf32> -> vector<8x128xf32>
    %c1_10 = arith.constant 1 : index
    %c0_11 = arith.constant 0 : index
    %14 = vector.load %arg3[%c1_10, %c0_11] : memref<3x128xf32, #tpu.memory_space<vmem>>, vector<1x128xf32>
    %15 = vector.broadcast %14 : vector<1x128xf32> to vector<8x128xf32>
    %16 = arith.addf %13, %15 : vector<8x128xf32>
    %cst_12 = arith.constant 0.000000e+00 : f32
    %17 = vector.broadcast %cst_12 : f32 to vector<8x128xf32>
    %18 = arith.maximumf %16, %17 : vector<8x128xf32>
    %19 = arith.truncf %18 : vector<8x128xf32> to vector<8x128xbf16>
    %c2 = arith.constant 2 : index
    %c0_13 = arith.constant 0 : index
    %c0_14 = arith.constant 0 : index
    %20 = vector.load %arg2[%c2, %c0_13, %c0_14] : memref<3x128x128xbf16, #tpu.memory_space<vmem>>, vector<1x128x128xbf16>
    %21 = vector.shape_cast %20 : vector<1x128x128xbf16> to vector<128x128xbf16>
    %cst_15 = arith.constant dense<0.000000e+00> : vector<8x128xf32>
    %22 = tpu.matmul %19, %21, %cst_15 {dimension_numbers = #tpu.dot_dimension_numbers<[1], [0], [0], [1], [0, 0, 1, 1], [], []>} : vector<8x128xbf16>, vector<128x128xbf16>, vector<8x128xf32> -> vector<8x128xf32>
    %c2_16 = arith.constant 2 : index
    %c0_17 = arith.constant 0 : index
    %23 = vector.load %arg3[%c2_16, %c0_17] : memref<3x128xf32, #tpu.memory_space<vmem>>, vector<1x128xf32>
    %24 = vector.broadcast %23 : vector<1x128xf32> to vector<8x128xf32>
    %25 = arith.addf %22, %24 : vector<8x128xf32>
    %c0_18 = arith.constant 0 : index
    %c0_19 = arith.constant 0 : index
    %26 = vector.load %arg4[%c0_18, %c0_19] : memref<8x128xf32, #tpu.memory_space<vmem>>, vector<8x128xf32>
    tpu.vector_store %arg4[%c0_18, %c0_19], %25 {strides = array<i32>} : memref<8x128xf32, #tpu.memory_space<vmem>>, vector<8x128xf32>,
    return
  }
  func.func @transform_0(%arg0: i32) -> (i32, i32) {
    %c0_i32 = arith.constant 0 : i32
    %c0_i32_0 = arith.constant 0 : i32
    return %arg0, %c0_i32 : i32, i32
  }
  func.func @transform_1(%arg0: i32) -> (i32, i32, i32) {
    %c0_i32 = arith.constant 0 : i32
    %c0_i32_0 = arith.constant 0 : i32
    %c0_i32_1 = arith.constant 0 : i32
    %c0_i32_2 = arith.constant 0 : i32
    return %c0_i32, %c0_i32_0, %c0_i32_1 : i32, i32, i32
  }
  func.func @transform_2(%arg0: i32) -> (i32, i32) {
    %c0_i32 = arith.constant 0 : i32
    %c0_i32_0 = arith.constant 0 : i32
    %c0_i32_1 = arith.constant 0 : i32
    return %c0_i32, %c0_i32_0 : i32, i32
  }
  func.func @transform_3(%arg0: i32) -> (i32, i32) {
    %c0_i32 = arith.constant 0 : i32
    %c0_i32_0 = arith.constant 0 : i32
    return %arg0, %c0_i32 : i32, i32
  }
}

</mosaic_0001>

<llo_original>
// kernel: tpu_custom_call.1
$region0: #{tpu_custom_call.1}
  #allocation0 [shape = 'u32[]', space=smem, size = 0x4, offset = 0x4, fixed_abs, tag = 'smem constant byte address 0x4 - core index']
  #allocation1 [shape = 'u32[72,128]{1,0:T(1,128)}', space=vmem, size = 0x9000, scoped, tag = 'internal scratch']
  %s0 = inlined_call_operand.hbm [shape: f32[2,32], index: 0, kind: input, shape index: {}]
  %s1 = inlined_call_operand.hbm [shape: bf16[3,128,128], index: 1, kind: input, shape index: {}]
  %s2 = inlined_call_operand.hbm [shape: f32[3,128], index: 2, kind: input, shape index: {}]
  %s3 = inlined_call_operand.hbm [shape: f32[2,128], index: 3, kind: output, shape index: {}]
  %s4 = sld [smem:[#allocation0]]
  $region34: #{tpu_custom_call.1} parent=0
    _
  %s6 = ssub.s32 1, %s4
  %s7 = scalar_select 0, %s6, %s4
  $region1: #{tpu_custom_call.1} parent=0
    #allocation2 [shape = 'u8[4096]{0}', space=vmem, size = 0x1000, scoped, tag = 'input window, operand 0, single buffered']
    #allocation3 [shape = 's32[1]{0}', space=sflag, size = 0x4, scoped, tag = 'scoped memory for tpu_custom_call.1']
    #allocation4 [shape = 's32[1]{0}', space=sflag, size = 0x4, scoped, tag = 'scoped memory for tpu_custom_call.1']
    #allocation5 [shape = 'u8[98304]{0}', space=vmem, size = 0x18000, scoped, tag = 'input window, operand 1, single buffered']
    #allocation6 [shape = 's32[1]{0}', space=sflag, size = 0x4, scoped, tag = 'scoped memory for tpu_custom_call.1']
    #allocation7 [shape = 'u8[2048]{0}', space=vmem, size = 0x800, scoped, tag = 'input window, operand 2, single buffered']
    #allocation8 [shape = 'u8[4096]{0}', space=vmem, size = 0x1000, scoped, tag = 'output window, operand 0, single buffered']
    %8 = vsyncpa [#allocation3], 0
    %9 = vsyncpa [#allocation6], 0
    %10 = vsyncpa [#allocation4], 0
    // Predicated region
    $region2: #{tpu_custom_call.1} parent=1 // pred_check
      _
    $region3: #{tpu_custom_call.1} parent=1 // pred_check_branch
      %12 = sbr.rel (0) target = $region5
    $region4: #{tpu_custom_call.1} parent=1 // pred_region
      %14 = vsyncadd [#allocation3], 96
      %s15 = sshll.u32 %s0, 4
      %s16 = int_to_ptr.hbm [resolvable:$true] %s15
      %s17 = sshll.u32 [#allocation2], 4
      %s18 = int_to_ptr.vmem [resolvable:$true] %s17
      %23 = dma.hbm_to_vmem [thread:$0]  %s16, 32, %s18, [#allocation3], 32, 32, 2
    $region5: #{tpu_custom_call.1} parent=1 // pred_fallthru
      _
    // Predicated region
    $region6: #{tpu_custom_call.1} parent=1 // pred_check
      _
    $region7: #{tpu_custom_call.1} parent=1 // pred_check_branch
      %25 = sbr.rel (0) target = $region9
    $region8: #{tpu_custom_call.1} parent=1 // pred_region
      %27 = vsyncadd [#allocation6], 0
      %s28 = sshll.u32 %s1, 4
      %s29 = int_to_ptr.hbm [resolvable:$true] %s28
      %s30 = sshll.u32 [#allocation5], 4
      %s31 = int_to_ptr.vmem [resolvable:$true] %s30
      %36 = dma.hbm_to_vmem [thread:$0]  %s29, 3072, %s31, [#allocation6], 64, 64, 4
    $region9: #{tpu_custom_call.1} parent=1 // pred_fallthru
      _
    // Predicated region
    $region10: #{tpu_custom_call.1} parent=1 // pred_check
      _
    $region11: #{tpu_custom_call.1} parent=1 // pred_check_branch
      %38 = sbr.rel (0) target = $region13
    $region12: #{tpu_custom_call.1} parent=1 // pred_region
      %40 = vsyncadd [#allocation6], 0
      %s42 = sshll.u32 %s2, 4
      %s43 = int_to_ptr.hbm [resolvable:$true] %s42
      %s44 = sshll.u32 [#allocation7], 4
      %s45 = int_to_ptr.vmem [resolvable:$true] %s44
      %47 = dma.hbm_to_vmem [thread:$0]  %s43, 64, %s45, [#allocation6]
    $region13: #{tpu_custom_call.1} parent=1 // pred_fallthru
      _
    // Predicated region
    $region14: #{tpu_custom_call.1} parent=1 // pred_check
      _
    $region15: #{tpu_custom_call.1} parent=1 // pred_check_branch
      %49 = sbr.rel (0) target = $region17
    $region16: #{tpu_custom_call.1} parent=1 // pred_region
      %51 = dma.done [#allocation3], 128
    $region17: #{tpu_custom_call.1} parent=1 // pred_fallthru
      _
    // Predicated region
    $region18: #{tpu_custom_call.1} parent=1 // pred_check
      _
    $region19: #{tpu_custom_call.1} parent=1 // pred_check_branch
      %53 = sbr.rel (0) target = $region21
    $region20: #{tpu_custom_call.1} parent=1 // pred_region
      %55 = dma.done [#allocation6], 3072
    $region21: #{tpu_custom_call.1} parent=1 // pred_fallthru
      _
    // Predicated region
    $region22: #{tpu_custom_call.1} parent=1 // pred_check
      _
    $region23: #{tpu_custom_call.1} parent=1 // pred_check_branch
      %57 = sbr.rel (0) target = $region25
    $region24: #{tpu_custom_call.1} parent=1 // pred_region
      %59 = dma.done [#allocation6], 64
    $region25: #{tpu_custom_call.1} parent=1 // pred_fallthru
      _
    %v61 = vld [vmem:[#allocation2] sm:$0xff]
    %v62 = vpack.c.bf16 %v61, %v61
    %v63 = vld [vmem:[#allocation5] sm:$0xf]
    %v64 = vld [vmem:[#allocation5 + $0x4] sm:$0xf]
    %v65 = vld [vmem:[#allocation5 + $0x8] sm:$0xf]
    %v66 = vld [vmem:[#allocation5 + $0xc] sm:$0xf]
    %v67 = vld [vmem:[#allocation7] sm:$0x1]
    %v68 = vperm.slane %v67, 0
    %v73 = vunpack.c.l.b16 %v63
    %v74 = vunpack.c.l.b16 %v64
    %v75 = vunpack.c.l.b16 %v65
    %v76 = vunpack.c.l.b16 %v66
    %v77 = vpack.c.b16 %v74, %v73
    %v78 = vpack.c.b16 %v76, %v75
    %vm81 = vcmask 261120
    %v83 = vsel %vm81, %v62, 0
    %85 = vmatpush.bf16.msra.mxu0 0
    %86 = vmatpush.bf16.msra.mxu0 0
    %87 = vmatpush.bf16.msra.mxu0 0
    %88 = vmatpush.bf16.msra.mxu0 0
    %89 = vmatpush.bf16.msra.mxu0 0
    %90 = vmatpush.bf16.msra.mxu0 0
    %91 = vmatpush.bf16.msra.mxu0 %v78
    %92 = vmatpush.bf16.msra.mxu0 %v77
    %93 = vmatmul.bf16.gmra.mxu0 %v83
    %v94 = vpop.f32.mrf.mxu0
    %v95 = vadd.f32 %v68, %v94
    %v96 = vpop.f32.mrf.mxu0
    %97 = vdwg.mxu0
    %v98 = vmax.f32 %v95, 0.0
    %v99 = vpack.c.bf16 %v98, %v98
    %s100 = scalar_lea.vmem [#allocation5], 64
    %v101 = vld [vmem:[%s100] sm:$0xf]
    %v102 = vld [vmem:[%s100 + $0x4] sm:$0xf]
    %v103 = vld [vmem:[%s100 + $0x8] sm:$0xf]
    %v104 = vld [vmem:[%s100 + $0xc] sm:$0xf]
    %v105 = vld [vmem:[%s100 + $0x10] sm:$0xf]
    %v106 = vld [vmem:[%s100 + $0x14] sm:$0xf]
    %v107 = vld [vmem:[%s100 + $0x18] sm:$0xf]
    %v108 = vld [vmem:[%s100 + $0x1c] sm:$0xf]
    %v109 = vld [vmem:[%s100 + $0x20] sm:$0xf]
    %v110 = vld [vmem:[%s100 + $0x24] sm:$0xf]
    %v111 = vld [vmem:[%s100 + $0x28] sm:$0xf]
    %v112 = vld [vmem:[%s100 + $0x2c] sm:$0xf]
    %v113 = vld [vmem:[%s100 + $0x30] sm:$0xf]
    %v114 = vld [vmem:[%s100 + $0x34] sm:$0xf]
    %v115 = vld [vmem:[%s100 + $0x38] sm:$0xf]
    %v116 = vld [vmem:[%s100 + $0x3c] sm:$0xf]
    %v117 = vld [vmem:[#allocation7 + $0x1] sm:$0x1]
    %v118 = vperm.slane %v117, 0
    %v135 = vunpack.c.l.b16 %v101
    %v136 = vunpack.c.l.b16 %v102
    %v137 = vunpack.c.l.b16 %v103
    %v138 = vunpack.c.l.b16 %v104
    %v139 = vunpack.c.l.b16 %v105
    %v140 = vunpack.c.l.b16 %v106
    %v141 = vunpack.c.l.b16 %v107
    %v142 = vunpack.c.l.b16 %v108
    %v143 = vunpack.c.l.b16 %v109
    %v144 = vunpack.c.l.b16 %v110
    %v145 = vunpack.c.l.b16 %v111
    %v146 = vunpack.c.l.b16 %v112
    %v147 = vunpack.c.l.b16 %v113
    %v148 = vunpack.c.l.b16 %v114
    %v149 = vunpack.c.l.b16 %v115
    %v150 = vunpack.c.l.b16 %v116
    %v151 = vpack.c.b16 %v136, %v135
    %v152 = vpack.c.b16 %v138, %v137
    %v153 = vpack.c.b16 %v140, %v139
    %v154 = vpack.c.b16 %v142, %v141
    %v155 = vpack.c.b16 %v144, %v143
    %v156 = vpack.c.b16 %v146, %v145
    %v157 = vpack.c.b16 %v148, %v147
    %v158 = vpack.c.b16 %v150, %v149
    %167 = vmatpush.bf16.msra.mxu0 %v158
    %168 = vmatpush.bf16.msra.mxu0 %v157
    %169 = vmatpush.bf16.msra.mxu0 %v156
    %170 = vmatpush.bf16.msra.mxu0 %v155
    %171 = vmatpush.bf16.msra.mxu0 %v154
    %172 = vmatpush.bf16.msra.mxu0 %v153
    %173 = vmatpush.bf16.msra.mxu0 %v152
    %174 = vmatpush.bf16.msra.mxu0 %v151
    %175 = vmatmul.bf16.gmra.mxu0 %v99
    %v176 = vpop.f32.mrf.mxu0
    %v177 = vadd.f32 %v118, %v176
    %v178 = vpop.f32.mrf.mxu0
    %179 = vdwg.mxu0
    %v180 = vmax.f32 %v177, 0.0
    %v181 = vpack.c.bf16 %v180, %v180
    %s182 = scalar_lea.vmem [#allocation5], 128
    %v183 = vld [vmem:[%s182] sm:$0xf]
    %v184 = vld [vmem:[%s182 + $0x4] sm:$0xf]
    %v185 = vld [vmem:[%s182 + $0x8] sm:$0xf]
    %v186 = vld [vmem:[%s182 + $0xc] sm:$0xf]
    %v187 = vld [vmem:[%s182 + $0x10] sm:$0xf]
    %v188 = vld [vmem:[%s182 + $0x14] sm:$0xf]
    %v189 = vld [vmem:[%s182 + $0x18] sm:$0xf]
    %v190 = vld [vmem:[%s182 + $0x1c] sm:$0xf]
    %v191 = vld [vmem:[%s182 + $0x20] sm:$0xf]
    %v192 = vld [vmem:[%s182 + $0x24] sm:$0xf]
    %v193 = vld [vmem:[%s182 + $0x28] sm:$0xf]
    %v194 = vld [vmem:[%s182 + $0x2c] sm:$0xf]
    %v195 = vld [vmem:[%s182 + $0x30] sm:$0xf]
    %v196 = vld [vmem:[%s182 + $0x34] sm:$0xf]
    %v197 = vld [vmem:[%s182 + $0x38] sm:$0xf]
    %v198 = vld [vmem:[%s182 + $0x3c] sm:$0xf]
    %v199 = vld [vmem:[#allocation7 + $0x2] sm:$0x1]
    %v200 = vperm.slane %v199, 0
    %v217 = vunpack.c.l.b16 %v183
    %v218 = vunpack.c.l.b16 %v184
    %v219 = vunpack.c.l.b16 %v185
    %v220 = vunpack.c.l.b16 %v186
    %v221 = vunpack.c.l.b16 %v187
    %v222 = vunpack.c.l.b16 %v188
    %v223 = vunpack.c.l.b16 %v189
    %v224 = vunpack.c.l.b16 %v190
    %v225 = vunpack.c.l.b16 %v191
    %v226 = vunpack.c.l.b16 %v192
    %v227 = vunpack.c.l.b16 %v193
    %v228 = vunpack.c.l.b16 %v194
    %v229 = vunpack.c.l.b16 %v195
    %v230 = vunpack.c.l.b16 %v196
    %v231 = vunpack.c.l.b16 %v197
    %v232 = vunpack.c.l.b16 %v198
    %v233 = vpack.c.b16 %v218, %v217
    %v234 = vpack.c.b16 %v220, %v219
    %v235 = vpack.c.b16 %v222, %v221
    %v236 = vpack.c.b16 %v224, %v223
    %v237 = vpack.c.b16 %v226, %v225
    %v238 = vpack.c.b16 %v228, %v227
    %v239 = vpack.c.b16 %v230, %v229
    %v240 = vpack.c.b16 %v232, %v231
    %249 = vmatpush.bf16.msra.mxu0 %v240
    %250 = vmatpush.bf16.msra.mxu0 %v239
    %251 = vmatpush.bf16.msra.mxu0 %v238
    %252 = vmatpush.bf16.msra.mxu0 %v237
    %253 = vmatpush.bf16.msra.mxu0 %v236
    %254 = vmatpush.bf16.msra.mxu0 %v235
    %255 = vmatpush.bf16.msra.mxu0 %v234
    %256 = vmatpush.bf16.msra.mxu0 %v233
    %257 = vmatmul.bf16.gmra.mxu0 %v181
    %v258 = vpop.f32.mrf.mxu0
    %v259 = vadd.f32 %v200, %v258
    %v260 = vpop.f32.mrf.mxu0
    %261 = vdwg.mxu0
    %262 = vst [vmem:[#allocation8] sm:$0xff] %v259
    // Predicated region
    $region26: #{tpu_custom_call.1} parent=1 // pred_check
      _
    $region27: #{tpu_custom_call.1} parent=1 // pred_check_branch
      %264 = sbr.rel (0) target = $region29
    $region28: #{tpu_custom_call.1} parent=1 // pred_region
      %266 = vsyncadd [#allocation4], 96
      %s267 = sshll.u32 [#allocation8], 4
      %s268 = int_to_ptr.vmem [resolvable:$true] %s267
      %s269 = sshll.u32 %s3, 4
      %s270 = int_to_ptr.hbm [resolvable:$true] %s269
      %275 = dma.vmem_to_hbm [thread:$0]  %s268, 32, %s270, [#allocation4], 32, 32, 2
    $region29: #{tpu_custom_call.1} parent=1 // pred_fallthru
      _
    // Predicated region
    $region30: #{tpu_custom_call.1} parent=1 // pred_check
      _
    $region31: #{tpu_custom_call.1} parent=1 // pred_check_branch
      %277 = sbr.rel (0) target = $region33
    $region32: #{tpu_custom_call.1} parent=1 // pred_region
      %279 = dma.done [#allocation4], 128
    $region33: #{tpu_custom_call.1} parent=1 // pred_fallthru
      _
    %280 = vsyncpa [#allocation3], 1
    %281 = vsyncpa [#allocation6], 1
    %282 = vsyncpa [#allocation4], 1

</llo_original>
